<compile_context>
chip_gen: v7x
topology: tpu7x:2x2x1
jax: 0.10.0
libtpu: 0.0.40
codegen_flags: <defaults>
</compile_context>

<pallas_src>
import functools
import math

import jax
import jax.numpy as jnp
from jax.experimental import pallas as pl
from jax.experimental.pallas import tpu as pltpu

LANES = 128
SUBLANES = 8
BLOCK_BYTES = 1 << 20              # ~1 MiB of DMA per streamed input per grid step
MAX_RESIDENT_WEIGHT_ROWS = 2048    # resident weight <= 2048*128*4B = 1 MiB of VMEM


def _cdiv(a, b):
    return -(-a // b)


def _round_up(a, b):
    return _cdiv(a, b) * b


def _is_leading_broadcast(pred_shape, w_shape):
    """True iff flat(pred) is a whole number of contiguous repeats of flat(weight)."""
    if len(w_shape) > len(pred_shape):
        return False
    ws = (1,) * (len(pred_shape) - len(w_shape)) + tuple(w_shape)
    for k in range(len(pred_shape) + 1):
        if all(d == 1 for d in ws[:k]) and tuple(ws[k:]) == tuple(pred_shape[k:]):
            return True
    return False


def _focal_l1_elementwise(pred, target, weight, *, alpha, gamma, activate, residual):
    """Elementwise focal-L1 loss in f32 (shared by the kernel body and the jnp tail)."""
    d = jnp.abs(pred.astype(jnp.float32) - target.astype(jnp.float32))
    # 2*sigmoid(a*x) - 1 == tanh(a*x/2): one EUP op, no sigmoid / pow chain.
    a = alpha if activate == 'tanh' else 0.5 * alpha
    mod = jnp.tanh(a * d)
    if gamma == 1.0:
        pass                          # default path: no pow at all
    elif gamma == 2.0:
        mod = mod * mod
    else:
        mod = mod ** gamma
    loss = d * mod
    if residual:
        loss = loss + d
    if weight is not None:
        loss = loss * weight.astype(jnp.float32)
    return loss


def _focal_l1_partial_kernel(*refs, alpha, gamma, activate, residual,
                             row_block, valid_rows, steps, full_blocks,
                             has_partial, weight_mode, w_rows):
    if weight_mode == 'none':
        pred_ref, tgt_ref, out_ref = refs
        w_ref = None
    else:
        pred_ref, tgt_ref, w_ref, out_ref = refs

    j = pl.program_id(1)

    @pl.when(j == 0)
    def _init():
        out_ref[...] = jnp.zeros_like(out_ref)

    loss = _focal_l1_elementwise(
        pred_ref[...], tgt_ref[...], None,
        alpha=alpha, gamma=gamma, activate=activate, residual=residual)

    if weight_mode == 'stream':
        loss = loss * w_ref[...].astype(jnp.float32)
    elif weight_mode == 'resident':
        # Small weight resident in VMEM (constant index_map -> DMA'd once); broadcast
        # over the repeats of its pattern inside the block (major-dim broadcast only).
        w = w_ref[...].astype(jnp.float32)                      # (w_rows, 128)
        loss = (loss.reshape(row_block // w_rows, w_rows, LANES) * w[None, :, :]
                ).reshape(row_block, LANES)

    def _accumulate(x):
        # Sublane-preserving partial reduction: pure VPU adds into the (8,128)
        # accumulator resident across the reduction grid axis.  The single
        # cross-lane reduce happens once, in the wrapper.
        out_ref[...] += x.reshape(row_block // SUBLANES, SUBLANES, LANES
                                  ).sum(axis=0).reshape(1, SUBLANES, LANES)

    if not has_partial:
        _accumulate(loss)
    else:
        blk = pl.program_id(0) * steps + j

        if full_blocks > 0:
            @pl.when(blk < full_blocks)            # fully in-bounds: no mask cost
            def _plain():
                _accumulate(loss)

        @pl.when(blk >= full_blocks)               # ragged / phantom block(s) only
        def _masked():
            row_ids = (jax.lax.broadcasted_iota(jnp.int32, (row_block, LANES), 0)
                       + blk * row_block)
            _accumulate(jnp.where(row_ids < valid_rows, loss, 0.0))


def focal_l1_loss_sum(pred, target, weight=None, *, alpha=0.2, gamma=1.0,
                      activate='sigmoid', residual=False, block_bytes=BLOCK_BYTES):
    """Returns the *sum* of the focal-L1 elementwise losses (f32 scalar)."""
    assert pred.shape == target.shape, (pred.shape, target.shape)
    n = pred.size
    elem = functools.partial(_focal_l1_elementwise, alpha=alpha, gamma=gamma,
                             activate=activate, residual=residual)

    # ---- classify the weight -------------------------------------------------
    weight_mode = 'none'
    w_res = None           # small VMEM-resident weight, shape (w_rows, 128)
    w_full = None          # full-size streamed weight, flat
    if weight is not None:
        if weight.size == n:
            weight_mode = 'stream'
            w_full = weight.reshape(-1)
        elif (_is_leading_broadcast(pred.shape, weight.shape)
              and weight.size % (SUBLANES * LANES) == 0
              and weight.size // LANES <= MAX_RESIDENT_WEIGHT_ROWS):
            # Element-wise (1, *) reweight: keep it small + resident, no HBM blow-up.
            weight_mode = 'resident'
            w_res = weight.reshape(weight.size // LANES, LANES)
        else:
            # TODO(synk): odd broadcast patterns (middle-dim broadcast / pattern not a
            # multiple of 1024 elems) still fall back to one HBM materialization.
            weight_mode = 'stream'
            w_dtype = weight.dtype
            if jnp.dtype(w_dtype).itemsize > jnp.dtype(pred.dtype).itemsize:
                w_dtype = pred.dtype     # fuse the downcast into the unavoidable copy
            w_full = jnp.broadcast_to(weight.astype(w_dtype), pred.shape).reshape(-1)

    pred_f = pred.reshape(-1)
    tgt_f = target.reshape(-1)

    # ---- split off the sub-128 lane tail (<=127 elems, plain jnp) -------------
    main = (n // LANES) * LANES
    tail_sum = jnp.float32(0.0)
    if main < n:
        assert weight_mode != 'resident'   # resident path implies n % 128 == 0
        w_tail = None if w_full is None else w_full[main:]
        tail_sum = jnp.sum(elem(pred_f[main:], tgt_f[main:], w_tail))
    if main == 0:
        return tail_sum

    # ---- tiling (zero-copy reshape when main == n) -----------------------------
    rows = main // LANES
    itemsize = jnp.dtype(pred.dtype).itemsize
    pack = {1: 32, 2: 16}.get(itemsize, 8)       # packed-sublane granularity
    unit = pack if weight_mode != 'resident' else math.lcm(w_res.shape[0], pack)
    target_rows = max(unit, (block_bytes // (LANES * itemsize)) // unit * unit)
    row_block = min(target_rows, _round_up(rows, unit))

    total_blocks = _cdiv(rows, row_block)
    # Always split the reduction in two so v7x's two TensorCores each take half
    # (harmless serial revisit on single-TC v5e/v6e).  An odd block count yields one
    # phantom block, clamped in the index_map and fully masked in-kernel.
    n_splits = 2 if total_blocks >= 2 else 1
    steps = _cdiv(total_blocks, n_splits)
    full_blocks = rows // row_block
    has_partial = (rows % row_block != 0) or (n_splits * steps != total_blocks)

    def _flat2(x):
        # Zero-copy bitcast when main == n (no pad, no slice copy).
        # TODO(synk): when n % 128 != 0 the [:main] slice still materializes one copy.
        return (x if main == n else x[:main]).reshape(rows, LANES)

    if n_splits * steps == total_blocks:
        def block_index(c, j):
            return (c * steps + j, 0)
    else:
        last_blk = total_blocks - 1

        def block_index(c, j):
            return (jnp.minimum(c * steps + j, last_blk), 0)

    stream_spec = pl.BlockSpec((row_block, LANES), block_index)
    operands = [_flat2(pred_f), _flat2(tgt_f)]
    in_specs = [stream_spec, stream_spec]
    if weight_mode == 'stream':
        operands.append(_flat2(w_full))
        in_specs.append(stream_spec)
    elif weight_mode == 'resident':
        operands.append(w_res)
        in_specs.append(pl.BlockSpec(w_res.shape, lambda c, j: (0, 0)))

    kernel = functools.partial(
        _focal_l1_partial_kernel, alpha=alpha, gamma=gamma, activate=activate,
        residual=residual, row_block=row_block, valid_rows=rows, steps=steps,
        full_blocks=full_blocks, has_partial=has_partial, weight_mode=weight_mode,
        w_rows=None if w_res is None else w_res.shape[0])

    partials = pl.pallas_call(
        kernel,
        out_shape=jax.ShapeDtypeStruct((n_splits, SUBLANES, LANES), jnp.float32),
        grid_spec=pltpu.PrefetchScalarGridSpec(
            num_scalar_prefetch=0,
            grid=(n_splits, steps),
            in_specs=in_specs,
            out_specs=pl.BlockSpec((1, SUBLANES, LANES), lambda c, j: (c, 0, 0)),
        ),
        compiler_params=pltpu.CompilerParams(
            dimension_semantics=("parallel", "arbitrary"),
            # Explicit budget: <=3 streamed inputs x 2 buffers x ~1 MiB + resident
            # weight + f32 intermediates; well under v5e/v6e/v7x VMEM.
            vmem_limit_bytes=32 * 1024 * 1024),
    )(*operands)

    return jnp.sum(partials) + tail_sum     # one tiny cross-lane reduce over <=2 vregs


class RegressionLoss:
    """JAX/Pallas port of the PyTorch RegressionLoss (focal_l1_loss criterion)."""

    def __init__(self, reduction='mean', loss_weight=1.0, **kwargs):
        assert reduction in [None, 'none', 'mean', 'sum']
        self.reduction = reduction
        self.loss_weight = loss_weight
        self.loss_kwargs = dict(
            alpha=kwargs.get('alpha', 0.2),
            gamma=kwargs.get('focal_gamma', 1.0),
            activate=kwargs.get('activate', 'sigmoid'),
            residual=kwargs.get('residual', False),
        )

    def __call__(self, pred, target, weight=None, **kwargs):
        if self.reduction in (None, 'none'):
            # TODO(synk): 'none' uses the shared plain-jnp formula (elementwise output);
            # an elementwise-output Pallas kernel could be added if this path matters.
            loss = _focal_l1_elementwise(pred, target, weight, **self.loss_kwargs)
            return self.loss_weight * loss
        total = focal_l1_loss_sum(pred, target, weight=weight, **self.loss_kwargs)
        if self.reduction == 'mean':
            loss = total / jnp.float32(pred.size)
        else:  # 'sum'
            loss = total
        return self.loss_weight * loss


if __name__ == "__main__":
    def ref_focal_l1(pred, target, weight=None, alpha=0.2, gamma=1.0,
                     activate='sigmoid', residual=False, reduction='mean'):
        d = jnp.abs(pred.astype(jnp.float32) - target.astype(jnp.float32))
        if activate == 'tanh':
            loss = d * jnp.tanh(alpha * d) ** gamma
        else:
            loss = d * (2.0 * jax.nn.sigmoid(alpha * d) - 1.0) ** gamma
        if residual:
            loss = loss + d
        if weight is not None:
            loss = loss * jnp.broadcast_to(weight.astype(jnp.float32), loss.shape)
        return loss.mean() if reduction == 'mean' else loss.sum()

    ks = jax.random.split(jax.random.PRNGKey(0), 12)

    # 1) (2,4,16,16) f32, no weight, 'mean' (default / common path, single block).
    p1 = jax.random.normal(ks[0], (2, 4, 16, 16), jnp.float32)
    t1 = jax.random.normal(ks[1], (2, 4, 16, 16), jnp.float32)
    l1 = RegressionLoss(reduction='mean', loss_weight=1.0)(p1, t1)
    jax.block_until_ready(l1)
    r1 = ref_focal_l1(p1, t1)
    assert jnp.allclose(l1, r1, rtol=1e-5, atol=1e-6), (l1, r1)

    # 2) bf16 inputs + small (1,C,H,W) weight: VMEM-resident weight path, ragged last
    #    block masked in-kernel, 'sum' with loss_weight.
    p2 = jax.random.normal(ks[2], (3, 4, 16, 16), jnp.bfloat16)
    t2 = jax.random.normal(ks[3], (3, 4, 16, 16), jnp.bfloat16)
    w2 = jax.random.uniform(ks[4], (1, 4, 16, 16), jnp.float32) + 0.5
    l2 = RegressionLoss(reduction='sum', loss_weight=2.0)(p2, t2, weight=w2)
    jax.block_until_ready(l2)
    r2 = 2.0 * ref_focal_l1(p2, t2, weight=w2, reduction='sum')
    assert jnp.allclose(l2, r2, rtol=1e-4, atol=1e-3), (l2, r2)

    # 3) ragged element count (sub-128 jnp tail), tanh / gamma=2 / residual / 'sum'.
    p3 = jax.random.normal(ks[5], (5, 7, 13), jnp.float32)
    t3 = jax.random.normal(ks[6], (5, 7, 13), jnp.float32)
    l3 = RegressionLoss(reduction='sum', loss_weight=1.0, alpha=0.5,
                        focal_gamma=2.0, activate='tanh', residual=True)(p3, t3)
    jax.block_until_ready(l3)
    r3 = ref_focal_l1(p3, t3, alpha=0.5, gamma=2.0, activate='tanh',
                      residual=True, reduction='sum')
    assert jnp.allclose(l3, r3, rtol=1e-5, atol=1e-5), (l3, r3)

    # 4) full-size streamed weight, many blocks with an odd count (phantom block on the
    #    2-way split, clamped + masked); tiny block_bytes just to exercise the machinery.
    p4 = jax.random.normal(ks[7], (18, 4, 16, 16), jnp.float32)
    t4 = jax.random.normal(ks[8], (18, 4, 16, 16), jnp.float32)
    w4 = jax.random.uniform(ks[9], (18, 4, 16, 16), jnp.float32) + 0.5
    s4 = focal_l1_loss_sum(p4, t4, weight=w4, block_bytes=8 * 1024)
    l4 = s4 / jnp.float32(p4.size)
    jax.block_until_ready(l4)
    r4 = ref_focal_l1(p4, t4, weight=w4, reduction='mean')
    assert jnp.allclose(l4, r4, rtol=1e-5, atol=1e-6), (l4, r4)

    # 5) default ~1 MiB blocks: ragged row count across the two-way split.
    p5 = jax.random.normal(ks[10], (10, 8, 64, 64), jnp.float32)
    t5 = jax.random.normal(ks[11], (10, 8, 64, 64), jnp.float32)
    l5 = RegressionLoss(reduction='mean')(p5, t5)
    jax.block_until_ready(l5)
    r5 = ref_focal_l1(p5, t5)
    assert jnp.allclose(l5, r5, rtol=1e-5, atol=1e-6), (l5, r5)

    print("KERNEL_OK")
</pallas_src>

<mosaic_0001>
module attributes {stable_mosaic.version = 11 : i64} {
  func.func @_focal_l1_partial_kernel(%arg0: i32, %arg1: i32, %arg2: memref<16x128xf32, #tpu.memory_space<vmem>>, %arg3: memref<16x128xf32, #tpu.memory_space<vmem>>, %arg4: memref<1x8x128xf32, #tpu.memory_space<vmem>>) attributes {dimension_semantics = [#tpu.dimension_semantics<parallel>, #tpu.dimension_semantics<arbitrary>], iteration_bounds = array<i64: 1, 1>, scalar_prefetch = 0 : i64, scratch_operands = 0 : i64, tpu.core_type = #tpu.core_type<tc>, window_params = [{transform_indices = @transform_0, window_bounds = array<i64: 16, 128>}, {transform_indices = @transform_1, window_bounds = array<i64: 16, 128>}, {transform_indices = @transform_2, window_bounds = array<i64: 1, 8, 128>}]} {
    %c0_i32 = arith.constant 0 : i32
    %0 = arith.cmpi eq, %arg1, %c0_i32 : i32
    %1 = arith.extui %0 : i1 to i32
    %c0_i32_0 = arith.constant 0 : i32
    %2 = arith.cmpi ne, %1, %c0_i32_0 : i32
    scf.if %2 {
      %cst_11 = arith.constant 0.000000e+00 : f32
      %17 = vector.broadcast %cst_11 : f32 to vector<1x8x128xf32>
      %c0_12 = arith.constant 0 : index
      %c0_13 = arith.constant 0 : index
      %c0_14 = arith.constant 0 : index
      %18 = vector.load %arg4[%c0_12, %c0_13, %c0_14] : memref<1x8x128xf32, #tpu.memory_space<vmem>>, vector<1x8x128xf32>
      tpu.vector_store %arg4[%c0_12, %c0_13, %c0_14], %17 {strides = array<i32>} : memref<1x8x128xf32, #tpu.memory_space<vmem>>, vector<1x8x128xf32>,
    } else {
    }
    %c0 = arith.constant 0 : index
    %c0_1 = arith.constant 0 : index
    %3 = vector.load %arg2[%c0, %c0_1] : memref<16x128xf32, #tpu.memory_space<vmem>>, vector<16x128xf32>
    %c0_2 = arith.constant 0 : index
    %c0_3 = arith.constant 0 : index
    %4 = vector.load %arg3[%c0_2, %c0_3] : memref<16x128xf32, #tpu.memory_space<vmem>>, vector<16x128xf32>
    %5 = arith.subf %3, %4 : vector<16x128xf32>
    %6 = math.absf %5 : vector<16x128xf32>
    %cst = arith.constant 1.000000e-01 : f32
    %7 = vector.broadcast %cst : f32 to vector<16x128xf32>
    %8 = arith.mulf %7, %6 : vector<16x128xf32>
    %9 = math.tanh %8 : vector<16x128xf32>
    %10 = arith.mulf %6, %9 : vector<16x128xf32>
    %c0_4 = arith.constant 0 : index
    %c0_5 = arith.constant 0 : index
    %c0_6 = arith.constant 0 : index
    %11 = vector.load %arg4[%c0_4, %c0_5, %c0_6] : memref<1x8x128xf32, #tpu.memory_space<vmem>>, vector<1x8x128xf32>
    %12 = vector.shape_cast %10 : vector<16x128xf32> to vector<2x8x128xf32>
    %cst_7 = arith.constant dense<0.000000e+00> : vector<8x128xf32>
    %13 = vector.multi_reduction <add>, %12, %cst_7 [0] : vector<2x8x128xf32> to vector<8x128xf32>
    %14 = vector.shape_cast %13 : vector<8x128xf32> to vector<1x8x128xf32>
    %15 = arith.addf %11, %14 : vector<1x8x128xf32>
    %c0_8 = arith.constant 0 : index
    %c0_9 = arith.constant 0 : index
    %c0_10 = arith.constant 0 : index
    %16 = vector.load %arg4[%c0_8, %c0_9, %c0_10] : memref<1x8x128xf32, #tpu.memory_space<vmem>>, vector<1x8x128xf32>
    tpu.vector_store %arg4[%c0_8, %c0_9, %c0_10], %15 {strides = array<i32>} : memref<1x8x128xf32, #tpu.memory_space<vmem>>, vector<1x8x128xf32>,
    return
  }
  func.func @transform_0(%arg0: i32, %arg1: i32) -> (i32, i32) {
    %c1_i32 = arith.constant 1 : i32
    %0 = arith.muli %arg0, %c1_i32 : i32
    %1 = arith.addi %0, %arg1 : i32
    %c0_i32 = arith.constant 0 : i32
    %c0_i32_0 = arith.constant 0 : i32
    return %1, %c0_i32 : i32, i32
  }
  func.func @transform_1(%arg0: i32, %arg1: i32) -> (i32, i32) {
    %c1_i32 = arith.constant 1 : i32
    %0 = arith.muli %arg0, %c1_i32 : i32
    %1 = arith.addi %0, %arg1 : i32
    %c0_i32 = arith.constant 0 : i32
    %c0_i32_0 = arith.constant 0 : i32
    return %1, %c0_i32 : i32, i32
  }
  func.func @transform_2(%arg0: i32, %arg1: i32) -> (i32, i32, i32) {
    %c0_i32 = arith.constant 0 : i32
    %c0_i32_0 = arith.constant 0 : i32
    %c0_i32_1 = arith.constant 0 : i32
    return %arg0, %c0_i32, %c0_i32_0 : i32, i32, i32
  }
}

</mosaic_0001>

<llo_original>
// kernel: tpu_custom_call.1
$region0: #{tpu_custom_call.1}
  #allocation0 [shape = 'u32[]', space=smem, size = 0x4, offset = 0x4, fixed_abs, tag = 'smem constant byte address 0x4 - core index']
  #allocation1 [shape = 'u32[144,128]{1,0:T(1,128)}', space=vmem, size = 0x12000, scoped, tag = 'internal scratch']
  %s0 = inlined_call_operand.hbm [shape: f32[16,128], index: 0, kind: input, shape index: {}]
  %s1 = inlined_call_operand.hbm [shape: f32[16,128], index: 1, kind: input, shape index: {}]
  %s2 = inlined_call_operand.hbm [shape: f32[1,8,128], index: 2, kind: output, shape index: {}]
  %s3 = sld [smem:[#allocation0]]
  $region30: #{tpu_custom_call.1} parent=0
    _
  %s5 = ssub.s32 1, %s3
  %s6 = scalar_select 0, %s5, %s3
  $region1: #{tpu_custom_call.1} parent=0
    #allocation2 [shape = 'u8[8192]{0}', space=vmem, size = 0x2000, scoped, tag = 'input window, operand 0, single buffered']
    #allocation3 [shape = 's32[1]{0}', space=sflag, size = 0x4, scoped, tag = 'scoped memory for tpu_custom_call.1']
    #allocation4 [shape = 's32[1]{0}', space=sflag, size = 0x4, scoped, tag = 'scoped memory for tpu_custom_call.1']
    #allocation5 [shape = 'u8[8192]{0}', space=vmem, size = 0x2000, scoped, tag = 'input window, operand 1, single buffered']
    #allocation6 [shape = 's32[1]{0}', space=sflag, size = 0x4, scoped, tag = 'scoped memory for tpu_custom_call.1']
    #allocation7 [shape = 'u8[4096]{0}', space=vmem, size = 0x1000, scoped, tag = 'output window, operand 0, single buffered']
    %7 = vsyncpa [#allocation3], 0
    %8 = vsyncpa [#allocation6], 0
    %9 = vsyncpa [#allocation4], 0
    // Predicated region
    $region2: #{tpu_custom_call.1} parent=1 // pred_check
      _
    $region3: #{tpu_custom_call.1} parent=1 // pred_check_branch
      %11 = sbr.rel (0) target = $region5
    $region4: #{tpu_custom_call.1} parent=1 // pred_region
      %s12 = sadd.s32 0, 0
      %s13 = smul.u32 2, %s12
      %s15 = ssub.s32 256, 256
      %16 = vsyncadd [#allocation3], %s15
      %s17 = smul.addr %s13, 128
      %s18 = scalar_lea.hbm %s0, %s17
      %s19 = sshll.u32 [#allocation2], 4
      %s20 = int_to_ptr.vmem [resolvable:$true] %s19
      %25 = dma.hbm_to_vmem [thread:$0]  %s18, 256, %s20, [#allocation3], 128, 128, 8
    $region5: #{tpu_custom_call.1} parent=1 // pred_fallthru
      _
    // Predicated region
    $region6: #{tpu_custom_call.1} parent=1 // pred_check
      _
    $region7: #{tpu_custom_call.1} parent=1 // pred_check_branch
      %27 = sbr.rel (0) target = $region9
    $region8: #{tpu_custom_call.1} parent=1 // pred_region
      %s28 = sadd.s32 0, 0
      %s29 = smul.u32 2, %s28
      %s31 = ssub.s32 256, 256
      %32 = vsyncadd [#allocation6], %s31
      %s33 = smul.addr %s29, 128
      %s34 = scalar_lea.hbm %s1, %s33
      %s35 = sshll.u32 [#allocation5], 4
      %s36 = int_to_ptr.vmem [resolvable:$true] %s35
      %41 = dma.hbm_to_vmem [thread:$0]  %s34, 256, %s36, [#allocation6], 128, 128, 8
    $region9: #{tpu_custom_call.1} parent=1 // pred_fallthru
      _
    // Predicated region
    $region10: #{tpu_custom_call.1} parent=1 // pred_check
      _
    $region11: #{tpu_custom_call.1} parent=1 // pred_check_branch
      %43 = sbr.rel (0) target = $region13
    $region12: #{tpu_custom_call.1} parent=1 // pred_region
      %44 = dma.done [#allocation3], 256
    $region13: #{tpu_custom_call.1} parent=1 // pred_fallthru
      _
    // Predicated region
    $region14: #{tpu_custom_call.1} parent=1 // pred_check
      _
    $region15: #{tpu_custom_call.1} parent=1 // pred_check_branch
      %46 = sbr.rel (0) target = $region17
    $region16: #{tpu_custom_call.1} parent=1 // pred_region
      %47 = dma.done [#allocation6], 256
    $region17: #{tpu_custom_call.1} parent=1 // pred_fallthru
      _
    %s48 = sadd.s32 0, 0
    %s49 = smul.u32 2, %s48
    %s50 = sadd.s32 0, 0
    %s51 = smul.u32 2, %s50
    %p52 = scmp.eq.s32.totalorder 0, 0
    // Predicated region
    $region18: #{tpu_custom_call.1} parent=1 // pred_check
      %p53 = pneg %p52
    $region19: #{tpu_custom_call.1} parent=1 // pred_check_branch
      %55 = sbr.rel (%p53) target = $region21
    $region20: #{tpu_custom_call.1} parent=1 // pred_region
      %56 = vst [vmem:[#allocation7] sm:$0xff] 0.0
    $region21: #{tpu_custom_call.1} parent=1 // pred_fallthru
      _
    %v57 = vld [vmem:[#allocation2] sm:$0xff]
    %v58 = vld [vmem:[#allocation2 + $0x8] sm:$0xff]
    %v59 = vld [vmem:[#allocation5] sm:$0xff]
    %v60 = vld [vmem:[#allocation5 + $0x8] sm:$0xff]
    %v61 = vsub.f32 %v57, %v59
    %v62 = vsub.f32 %v58, %v60
    %v63 = vand.u32 2147483647, %v61
    %v64 = vand.u32 2147483647, %v62
    %v65 = vmul.f32 %v63, 0.1
    %v66 = vmul.f32 %v64, 0.1
    %v67 = vtanh.pop %v65
    %v68 = vtanh.pop %v66
    %v69 = vmul.f32 %v63, %v67
    %v70 = vmul.f32 %v64, %v68
    %v71 = vld [vmem:[#allocation7] sm:$0xff]
    %v72 = vadd.f32 %v69, %v70
    %v73 = vadd.f32 %v71, %v72
    %74 = vst [vmem:[#allocation7] sm:$0xff] %v73
    // Predicated region
    $region22: #{tpu_custom_call.1} parent=1 // pred_check
      _
    $region23: #{tpu_custom_call.1} parent=1 // pred_check_branch
      %76 = sbr.rel (0) target = $region25
    $region24: #{tpu_custom_call.1} parent=1 // pred_region
      %s78 = ssub.s32 128, 128
      %79 = vsyncadd [#allocation4], %s78
      %s81 = sshll.u32 [#allocation7], 4
      %s82 = int_to_ptr.vmem [resolvable:$true] %s81
      %84 = dma.vmem_to_hbm [thread:$0]  %s82, 128, %s2, [#allocation4]
    $region25: #{tpu_custom_call.1} parent=1 // pred_fallthru
      _
    // Predicated region
    $region26: #{tpu_custom_call.1} parent=1 // pred_check
      _
    $region27: #{tpu_custom_call.1} parent=1 // pred_check_branch
      %86 = sbr.rel (0) target = $region29
    $region28: #{tpu_custom_call.1} parent=1 // pred_region
      %87 = dma.done [#allocation4], 128
    $region29: #{tpu_custom_call.1} parent=1 // pred_fallthru
      _
    %88 = vsyncpa [#allocation3], 1
    %89 = vsyncpa [#allocation6], 1
    %90 = vsyncpa [#allocation4], 1

</llo_original>
